<compile_context>
chip_gen: v7x
topology: tpu7x:2x2x1
jax: 0.10.0
libtpu: 0.0.40
codegen_flags: <defaults>
</compile_context>

<pallas_src>
import functools

import jax
import jax.numpy as jnp
from jax.experimental import pallas as pl
from jax.experimental.pallas import tpu as pltpu


def _round_up(x, m):
    return ((x + m - 1) // m) * m


def _weighted_bce_kernel(logits_ref, targets_ref, w_ref, out_ref, acc_ref, *,
                         block_b, n_inner, n_valid_rows, inv_total,
                         mask_needed):
    c = pl.program_id(0)            # outer ("parallel") axis -> per-core partial
    i = pl.program_id(1)            # inner ("arbitrary") reduction axis

    @pl.when(i == 0)
    def _():
        acc_ref[...] = jnp.zeros_like(acc_ref)

    x = logits_ref[...].astype(jnp.float32)       # (block_b, C)
    y = targets_ref[...].astype(jnp.float32)      # (block_b, C)

    # Numerically stable BCE-with-logits (matches torch.nn.BCEWithLogitsLoss):
    #   loss = max(x, 0) - x*y + log1p(exp(-|x|))
    loss = jnp.maximum(x, 0.0) - x * y + jnp.log1p(jnp.exp(-jnp.abs(x)))
    # TODO(synk): if a bundle profile shows the EUP slot saturating on v6e/v7x,
    # the exp/log1p could run in bf16; kept f32 here for exactness.

    bb, cc = loss.shape

    def _accumulate(vals):
        # Per-column partial sums kept vreg-shaped (8, C): pure cross-vreg VPU
        # adds, no per-tile cross-lane reduce and no per-tile scalar store.
        acc_ref[...] += vals.reshape(bb // 8, 8, cc).sum(axis=0)

    if mask_needed:
        tile = c * n_inner + i
        row_start = tile * block_b
        is_ragged = row_start + block_b > n_valid_rows

        # Full tiles skip the iota/compare/select entirely (v6e/v7x VPU win).
        @pl.when(jnp.logical_not(is_ragged))
        def _():
            _accumulate(loss)

        @pl.when(is_ragged)
        def _():
            row_ids = row_start + jax.lax.broadcasted_iota(
                jnp.int32, (bb, 1), 0)
            _accumulate(jnp.where(row_ids < n_valid_rows, loss, 0.0))
    else:
        _accumulate(loss)

    @pl.when(i == pl.num_programs(1) - 1)
    def _():
        col_sums = jnp.sum(acc_ref[...], axis=0, keepdims=True)     # (1, C)
        partial = jnp.sum(col_sums * w_ref[...]) * inv_total
        out_ref[...] = jnp.broadcast_to(partial, out_ref.shape)


def weighted_bce_with_logits_loss(logits, targets, weights=None, *,
                                  block_b=None):
    """Pallas implementation of WeightedBCEWithLogitsLoss.forward.

    logits:  (B, C) float (any float dtype; cast to f32 in-kernel — ship bf16
             to halve HBM traffic)
    targets: (B, C) any numeric dtype (cast to f32 in-kernel, like PyTorch)
    weights: (C,) per-class weights (normalized inside, like __init__), or
             None -> plain mean BCE (the module's `weights is None` branch).
    """
    B, C = logits.shape

    if weights is None:
        # PyTorch's constructor effectively requires weights; with None the
        # module returns the plain mean BCE, which unnormalized ones give.
        w = jnp.ones((C,), jnp.float32)
    else:
        w = jnp.asarray(weights, jnp.float32).reshape(-1)
        w = w / jnp.sum(w)
    w = w.reshape(1, C)

    # ---- generation-aware VMEM budget -------------------------------------
    vmem_limit = 32 * 1024 * 1024                 # safe fallback on every gen
    try:
        cap = getattr(pltpu.get_tpu_info(), "vmem_capacity_bytes", None)
        if cap:
            # half of physical: 32 MiB on v7x (64 MiB), 64 MiB on v5e/v6e.
            vmem_limit = int(min(int(cap) // 2, 64 * 1024 * 1024))
    except Exception:
        pass

    # ---- row-tile size -----------------------------------------------------
    c_lanes = _round_up(C, 128)                   # lane-padded width (VMEM layout)
    in_itemsize = logits.dtype.itemsize + targets.dtype.itemsize

    if block_b is None:
        # VMEM per row: double-buffered native-dtype input tiles plus ~4
        # full-tile f32 temporaries (x, y, loss, masked-loss) that the
        # compiler may materialize.
        bytes_per_row = c_lanes * (2 * in_itemsize + 4 * 4)
        budget = int(0.70 * vmem_limit) - 10 * c_lanes * 4 - 64 * 1024
        max_rows_vmem = max(32, budget // bytes_per_row)
        # Target ~6 MiB of raw input bytes per grid step to hide the ~0.35 us
        # per-step overhead, never exceeding the VMEM budget.
        target_rows = max(32, (6 * 1024 * 1024) // max(1, c_lanes * in_itemsize))
        block_b = min(8192, max_rows_vmem, target_rows)
        # TODO(synk): very large C (many-thousand classes) would additionally
        # need column tiling; not needed for typical classification heads.

    block_b = min(block_b, _round_up(B, 32))
    block_b = max(32, (block_b // 32) * 32)       # safe for f32/bf16/int8 rows

    n_tiles = (B + block_b - 1) // block_b
    n_outer = 2 if n_tiles >= 2 else 1            # both TCs on v7x / megacore
    n_inner = (n_tiles + n_outer - 1) // n_outer
    padded_tiles = n_outer * n_inner

    mask_needed = padded_tiles * block_b != B     # any ragged / filler tile?
    clamp_needed = padded_tiles != n_tiles        # odd tile count -> one filler

    if clamp_needed:
        # Filler tile re-reads the last real tile (safe DMA); its contribution
        # is fully zeroed by the in-kernel row mask (global row ids >= B).
        def row_block(c, i):
            return (jnp.minimum(c * n_inner + i, n_tiles - 1), 0)
    else:
        def row_block(c, i):
            return (c * n_inner + i, 0)

    inv_total = 1.0 / float(B * C)                # divisor = ORIGINAL B*C

    kernel = functools.partial(
        _weighted_bce_kernel,
        block_b=block_b, n_inner=n_inner, n_valid_rows=B,
        inv_total=inv_total, mask_needed=mask_needed)

    partials = pl.pallas_call(
        kernel,
        out_shape=jax.ShapeDtypeStruct((n_outer * 8, 128), jnp.float32),
        grid=(n_outer, n_inner),
        in_specs=[
            pl.BlockSpec((block_b, C), row_block),       # full-C, no padding
            pl.BlockSpec((block_b, C), row_block),
            pl.BlockSpec((1, C), lambda c, i: (0, 0)),   # resident weights
        ],
        out_specs=pl.BlockSpec((8, 128), lambda c, i: (c, 0)),
        scratch_shapes=[pltpu.VMEM((8, C), jnp.float32)],
        compiler_params=pltpu.CompilerParams(
            dimension_semantics=("parallel", "arbitrary"),
            vmem_limit_bytes=int(vmem_limit),
        ),
    )(logits, targets, w)

    # One (8,128) block per core, each filled with that core's partial sum.
    return jnp.sum(partials[0::8, 0])


def _reference(logits, targets, weights):
    # Pure-JAX reference mirroring the PyTorch module.
    w = jnp.asarray(weights, jnp.float32)
    w = w / jnp.sum(w)
    x = logits.astype(jnp.float32)
    y = targets.astype(jnp.float32)
    loss = jnp.maximum(x, 0.0) - x * y + jnp.log1p(jnp.exp(-jnp.abs(x)))
    return jnp.mean(loss * w[None, :])


if __name__ == "__main__":
    key = jax.random.PRNGKey(0)
    k1, k2, k3, k4 = jax.random.split(key, 4)

    # Primary small example: batch=8, classes=16 (multi-label head).
    # Inputs shipped narrow (bf16) — the kernel casts to f32 on the VPU.
    B, C = 8, 16
    logits = (jax.random.normal(k1, (B, C), dtype=jnp.float32) * 2.0
              ).astype(jnp.bfloat16)
    targets = (jax.random.uniform(k2, (B, C)) > 0.5).astype(jnp.bfloat16)
    weights = jnp.arange(1, C + 1, dtype=jnp.float32)

    out = jax.block_until_ready(
        weighted_bce_with_logits_loss(logits, targets, weights))
    ref = _reference(logits, targets, weights)
    assert jnp.allclose(out, ref, rtol=1e-5, atol=1e-6), (out, ref)

    # Multi-tile path: dual-core grid split + ragged last tile (B=100, tile=32).
    B2 = 100
    logits2 = (jax.random.normal(k3, (B2, C), dtype=jnp.float32) * 2.0
               ).astype(jnp.bfloat16)
    targets2 = (jax.random.uniform(k4, (B2, C)) > 0.5).astype(jnp.bfloat16)
    out2 = jax.block_until_ready(
        weighted_bce_with_logits_loss(logits2, targets2, weights, block_b=32))
    ref2 = _reference(logits2, targets2, weights)
    assert jnp.allclose(out2, ref2, rtol=1e-5, atol=1e-6), (out2, ref2)

    # Odd tile count: exercises the clamped, fully-masked filler tile.
    out3 = jax.block_until_ready(
        weighted_bce_with_logits_loss(logits2[:72], targets2[:72], weights,
                                      block_b=32))
    ref3 = _reference(logits2[:72], targets2[:72], weights)
    assert jnp.allclose(out3, ref3, rtol=1e-5, atol=1e-6), (out3, ref3)

    print("KERNEL_OK")
</pallas_src>

<mosaic_0001>
module attributes {stable_mosaic.version = 11 : i64} {
  func.func @_weighted_bce_kernel(%arg0: i32, %arg1: i32, %arg2: memref<32x16xbf16, #tpu.memory_space<vmem>>, %arg3: memref<32x16xbf16, #tpu.memory_space<vmem>>, %arg4: memref<1x16xf32, #tpu.memory_space<vmem>>, %arg5: memref<8x128xf32, #tpu.memory_space<vmem>>, %arg6: memref<8x16xf32, #tpu.memory_space<vmem>>) attributes {dimension_semantics = [#tpu.dimension_semantics<parallel>, #tpu.dimension_semantics<arbitrary>], iteration_bounds = array<i64: 1, 1>, scalar_prefetch = 0 : i64, scratch_operands = 1 : i64, tpu.core_type = #tpu.core_type<tc>, window_params = [{transform_indices = @transform_0, window_bounds = array<i64: 32, 16>}, {transform_indices = @transform_1, window_bounds = array<i64: 32, 16>}, {pipeline_mode = #tpu.pipeline_mode<synchronous>, transform_indices = @transform_2, window_bounds = array<i64: 1, 16>}, {transform_indices = @transform_3, window_bounds = array<i64: 8, 128>}]} {
    %c0_i32 = arith.constant 0 : i32
    %0 = arith.cmpi eq, %arg1, %c0_i32 : i32
    %1 = arith.extui %0 : i1 to i32
    %c0_i32_0 = arith.constant 0 : i32
    %2 = arith.cmpi ne, %1, %c0_i32_0 : i32
    scf.if %2 {
      %cst_10 = arith.constant 0.000000e+00 : f32
      %30 = vector.broadcast %cst_10 : f32 to vector<8x16xf32>
      %c0_11 = arith.constant 0 : index
      %c0_12 = arith.constant 0 : index
      %31 = vector.load %arg6[%c0_11, %c0_12] : memref<8x16xf32, #tpu.memory_space<vmem>>, vector<8x16xf32>
      tpu.vector_store %arg6[%c0_11, %c0_12], %30 {strides = array<i32>} : memref<8x16xf32, #tpu.memory_space<vmem>>, vector<8x16xf32>,
    } else {
    }
    %c0 = arith.constant 0 : index
    %c0_1 = arith.constant 0 : index
    %3 = vector.load %arg2[%c0, %c0_1] : memref<32x16xbf16, #tpu.memory_space<vmem>>, vector<32x16xbf16>
    %4 = arith.extf %3 : vector<32x16xbf16> to vector<32x16xf32>
    %c0_2 = arith.constant 0 : index
    %c0_3 = arith.constant 0 : index
    %5 = vector.load %arg3[%c0_2, %c0_3] : memref<32x16xbf16, #tpu.memory_space<vmem>>, vector<32x16xbf16>
    %6 = arith.extf %5 : vector<32x16xbf16> to vector<32x16xf32>
    %cst = arith.constant 0.000000e+00 : f32
    %7 = vector.broadcast %cst : f32 to vector<32x16xf32>
    %8 = arith.maximumf %4, %7 : vector<32x16xf32>
    %9 = arith.mulf %4, %6 : vector<32x16xf32>
    %10 = arith.subf %8, %9 : vector<32x16xf32>
    %11 = math.absf %4 : vector<32x16xf32>
    %cst_4 = arith.constant 0.000000e+00 : f32
    %12 = vector.broadcast %cst_4 : f32 to vector<32x16xf32>
    %13 = arith.subf %12, %11 : vector<32x16xf32>
    %14 = math.exp %13 : vector<32x16xf32>
    %15 = math.log1p %14 : vector<32x16xf32>
    %16 = arith.addf %10, %15 : vector<32x16xf32>
    %c1_i32 = arith.constant 1 : i32
    %17 = arith.muli %arg0, %c1_i32 : i32
    %18 = arith.addi %17, %arg1 : i32
    %c32_i32 = arith.constant 32 : i32
    %19 = arith.muli %18, %c32_i32 : i32
    %c32_i32_5 = arith.constant 32 : i32
    %20 = arith.addi %19, %c32_i32_5 : i32
    %c8_i32 = arith.constant 8 : i32
    %21 = arith.cmpi sgt, %20, %c8_i32 : i32
    %true = arith.constant true
    %22 = arith.xori %21, %true : i1
    %23 = arith.extui %22 : i1 to i32
    %c0_i32_6 = arith.constant 0 : i32
    %24 = arith.cmpi ne, %23, %c0_i32_6 : i32
    scf.if %24 {
      %c0_10 = arith.constant 0 : index
      %c0_11 = arith.constant 0 : index
      %30 = vector.load %arg6[%c0_10, %c0_11] : memref<8x16xf32, #tpu.memory_space<vmem>>, vector<8x16xf32>
      %31 = vector.shape_cast %16 : vector<32x16xf32> to vector<4x8x16xf32>
      %cst_12 = arith.constant dense<0.000000e+00> : vector<8x16xf32>
      %32 = vector.multi_reduction <add>, %31, %cst_12 [0] : vector<4x8x16xf32> to vector<8x16xf32>
      %33 = arith.addf %30, %32 : vector<8x16xf32>
      %c0_13 = arith.constant 0 : index
      %c0_14 = arith.constant 0 : index
      %34 = vector.load %arg6[%c0_13, %c0_14] : memref<8x16xf32, #tpu.memory_space<vmem>>, vector<8x16xf32>
      tpu.vector_store %arg6[%c0_13, %c0_14], %33 {strides = array<i32>} : memref<8x16xf32, #tpu.memory_space<vmem>>, vector<8x16xf32>,
    } else {
    }
    %25 = arith.extui %21 : i1 to i32
    %c0_i32_7 = arith.constant 0 : i32
    %26 = arith.cmpi ne, %25, %c0_i32_7 : i32
    scf.if %26 {
      %30 = tpu.iota {dimensions = array<i32: 0>} : vector<32x1xi32>
      %31 = vector.broadcast %19 : i32 to vector<32x1xi32>
      %32 = arith.addi %31, %30 : vector<32x1xi32>
      %c8_i32_10 = arith.constant 8 : i32
      %33 = vector.broadcast %c8_i32_10 : i32 to vector<32x1xi32>
      %34 = arith.cmpi slt, %32, %33 : vector<32x1xi32>
      %cst_11 = arith.constant 0.000000e+00 : f32
      %35 = vector.shape_cast %34 : vector<32x1xi1> to vector<32x1xi1>
      %36 = vector.broadcast %35 : vector<32x1xi1> to vector<32x16xi1>
      %37 = vector.broadcast %cst_11 : f32 to vector<32x16xf32>
      %38 = arith.select %36, %16, %37 : vector<32x16xi1>, vector<32x16xf32>
      %c0_12 = arith.constant 0 : index
      %c0_13 = arith.constant 0 : index
      %39 = vector.load %arg6[%c0_12, %c0_13] : memref<8x16xf32, #tpu.memory_space<vmem>>, vector<8x16xf32>
      %40 = vector.shape_cast %38 : vector<32x16xf32> to vector<4x8x16xf32>
      %cst_14 = arith.constant dense<0.000000e+00> : vector<8x16xf32>
      %41 = vector.multi_reduction <add>, %40, %cst_14 [0] : vector<4x8x16xf32> to vector<8x16xf32>
      %42 = arith.addf %39, %41 : vector<8x16xf32>
      %c0_15 = arith.constant 0 : index
      %c0_16 = arith.constant 0 : index
      %43 = vector.load %arg6[%c0_15, %c0_16] : memref<8x16xf32, #tpu.memory_space<vmem>>, vector<8x16xf32>
      tpu.vector_store %arg6[%c0_15, %c0_16], %42 {strides = array<i32>} : memref<8x16xf32, #tpu.memory_space<vmem>>, vector<8x16xf32>,
    } else {
    }
    %c0_i32_8 = arith.constant 0 : i32
    %27 = arith.cmpi eq, %arg1, %c0_i32_8 : i32
    %28 = arith.extui %27 : i1 to i32
    %c0_i32_9 = arith.constant 0 : i32
    %29 = arith.cmpi ne, %28, %c0_i32_9 : i32
    scf.if %29 {
      %c0_10 = arith.constant 0 : index
      %c0_11 = arith.constant 0 : index
      %30 = vector.load %arg6[%c0_10, %c0_11] : memref<8x16xf32, #tpu.memory_space<vmem>>, vector<8x16xf32>
      %cst_12 = arith.constant dense<0.000000e+00> : vector<16xf32>
      %31 = vector.multi_reduction <add>, %30, %cst_12 [0] : vector<8x16xf32> to vector<16xf32>
      %32 = vector.shape_cast %31 : vector<16xf32> to vector<1x16xf32>
      %c0_13 = arith.constant 0 : index
      %c0_14 = arith.constant 0 : index
      %33 = vector.load %arg4[%c0_13, %c0_14] : memref<1x16xf32, #tpu.memory_space<vmem>>, vector<1x16xf32>
      %34 = arith.mulf %32, %33 : vector<1x16xf32>
      %35 = vector.shape_cast %34 : vector<1x16xf32> to vector<1x1x16xf32>
      %cst_15 = arith.constant dense<0.000000e+00> : vector<1xf32>
      %36 = vector.multi_reduction <add>, %35, %cst_15 [1, 2] : vector<1x1x16xf32> to vector<1xf32>
      %37 = vector.shape_cast %36 : vector<1xf32> to vector<1x1x1xf32>
      %38 = vector.extract %37[0, 0, 0] : f32 from vector<1x1x1xf32>
      %cst_16 = arith.constant 7.812500e-03 : f32
      %39 = arith.mulf %38, %cst_16 : f32
      %40 = vector.broadcast %39 : f32 to vector<8x128xf32>
      %c0_17 = arith.constant 0 : index
      %c0_18 = arith.constant 0 : index
      %41 = vector.load %arg5[%c0_17, %c0_18] : memref<8x128xf32, #tpu.memory_space<vmem>>, vector<8x128xf32>
      tpu.vector_store %arg5[%c0_17, %c0_18], %40 {strides = array<i32>} : memref<8x128xf32, #tpu.memory_space<vmem>>, vector<8x128xf32>,
    } else {
    }
    return
  }
  func.func @transform_0(%arg0: i32, %arg1: i32) -> (i32, i32) {
    %c1_i32 = arith.constant 1 : i32
    %0 = arith.muli %arg0, %c1_i32 : i32
    %1 = arith.addi %0, %arg1 : i32
    %c0_i32 = arith.constant 0 : i32
    %c0_i32_0 = arith.constant 0 : i32
    return %1, %c0_i32 : i32, i32
  }
  func.func @transform_1(%arg0: i32, %arg1: i32) -> (i32, i32) {
    %c1_i32 = arith.constant 1 : i32
    %0 = arith.muli %arg0, %c1_i32 : i32
    %1 = arith.addi %0, %arg1 : i32
    %c0_i32 = arith.constant 0 : i32
    %c0_i32_0 = arith.constant 0 : i32
    return %1, %c0_i32 : i32, i32
  }
  func.func @transform_2(%arg0: i32, %arg1: i32) -> (i32, i32) {
    %c0_i32 = arith.constant 0 : i32
    %c0_i32_0 = arith.constant 0 : i32
    %c0_i32_1 = arith.constant 0 : i32
    return %c0_i32, %c0_i32_0 : i32, i32
  }
  func.func @transform_3(%arg0: i32, %arg1: i32) -> (i32, i32) {
    %c0_i32 = arith.constant 0 : i32
    %c0_i32_0 = arith.constant 0 : i32
    return %arg0, %c0_i32 : i32, i32
  }
}

</mosaic_0001>

<llo_original>
// kernel: tpu_custom_call.1
$region0: #{tpu_custom_call.1}
  #allocation0 [shape = 'u32[]', space=smem, size = 0x4, offset = 0x4, fixed_abs, tag = 'smem constant byte address 0x4 - core index']
  #allocation1 [shape = 'u32[144,128]{1,0:T(1,128)}', space=vmem, size = 0x12000, scoped, tag = 'internal scratch']
  #allocation2 [shape = 'f32[8,16]{1,0:T(8,128)}', space=vmem, size = 0x1000, scoped, tag = 'scratch operand']
  %s0 = inlined_call_operand.hbm [shape: bf16[8,16], index: 0, kind: input, shape index: {}]
  %s1 = inlined_call_operand.hbm [shape: bf16[8,16], index: 1, kind: input, shape index: {}]
  %s2 = inlined_call_operand.vmem [shape: f32[1,16], index: 2, kind: input, shape index: {}]
  %s3 = inlined_call_operand.hbm [shape: f32[8,128], index: 3, kind: output, shape index: {}]
  %s4 = sld [smem:[#allocation0]]
  $region46: #{tpu_custom_call.1} parent=0
    _
  %s6 = ssub.s32 1, %s4
  %s7 = scalar_select 0, %s6, %s4
  $region1: #{tpu_custom_call.1} parent=0
    #allocation3 [shape = 'u8[8192]{0}', space=vmem, size = 0x2000, scoped, tag = 'input window, operand 0, single buffered']
    #allocation4 [shape = 's32[1]{0}', space=sflag, size = 0x4, scoped, tag = 'scoped memory for tpu_custom_call.1']
    #allocation5 [shape = 's32[1]{0}', space=sflag, size = 0x4, scoped, tag = 'scoped memory for tpu_custom_call.1']
    #allocation6 [shape = 'u8[8192]{0}', space=vmem, size = 0x2000, scoped, tag = 'input window, operand 1, single buffered']
    #allocation7 [shape = 's32[1]{0}', space=sflag, size = 0x4, scoped, tag = 'scoped memory for tpu_custom_call.1']
    #allocation8 [shape = 'u8[4096]{0}', space=vmem, size = 0x1000, scoped, tag = 'output window, operand 0, single buffered']
    %8 = vsyncpa [#allocation4], 0
    %9 = vsyncpa [#allocation7], 0
    %10 = vsyncpa [#allocation5], 0
    // Predicated region
    $region2: #{tpu_custom_call.1} parent=1 // pred_check
      _
    $region3: #{tpu_custom_call.1} parent=1 // pred_check_branch
      %12 = sbr.rel (0) target = $region5
    $region4: #{tpu_custom_call.1} parent=1 // pred_region
      %s13 = sadd.s32 0, 0
      %s14 = smul.u32 4, %s13
      %s15 = ssub.s32 1, %s14
      %s16 = smul.u32 64, %s15
      %s18 = ssub.s32 256, %s16
      %19 = vsyncadd [#allocation4], %s18
      %p20 = scmp.ne.s32.totalorder 0, %s16
      %s21 = smul.addr %s14, 64
      %s22 = scalar_lea.hbm %s0, %s21
      %s23 = smul.u32 4, %s15
      %s24 = sshll.u32 [#allocation3], 4
      %s25 = int_to_ptr.vmem [resolvable:$true] %s24
      %s26 = sshll.u32 %s23, 4
      %30 = dma.hbm_to_vmem [thread:$0]  (%p20), %s22, %s26, %s25, [#allocation4], 64, 64, 4
    $region5: #{tpu_custom_call.1} parent=1 // pred_fallthru
      _
    // Predicated region
    $region6: #{tpu_custom_call.1} parent=1 // pred_check
      _
    $region7: #{tpu_custom_call.1} parent=1 // pred_check_branch
      %32 = sbr.rel (0) target = $region9
    $region8: #{tpu_custom_call.1} parent=1 // pred_region
      %s33 = sadd.s32 0, 0
      %s34 = smul.u32 4, %s33
      %s35 = ssub.s32 1, %s34
      %s36 = smul.u32 64, %s35
      %s38 = ssub.s32 256, %s36
      %39 = vsyncadd [#allocation7], %s38
      %p40 = scmp.ne.s32.totalorder 0, %s36
      %s41 = smul.addr %s34, 64
      %s42 = scalar_lea.hbm %s1, %s41
      %s43 = smul.u32 4, %s35
      %s44 = sshll.u32 [#allocation6], 4
      %s45 = int_to_ptr.vmem [resolvable:$true] %s44
      %s46 = sshll.u32 %s43, 4
      %50 = dma.hbm_to_vmem [thread:$0]  (%p40), %s42, %s46, %s45, [#allocation7], 64, 64, 4
    $region9: #{tpu_custom_call.1} parent=1 // pred_fallthru
      _
    // Predicated region
    $region10: #{tpu_custom_call.1} parent=1 // pred_check
      _
    $region11: #{tpu_custom_call.1} parent=1 // pred_check_branch
      %52 = sbr.rel (0) target = $region13
    $region12: #{tpu_custom_call.1} parent=1 // pred_region
      _
    $region13: #{tpu_custom_call.1} parent=1 // pred_fallthru
      _
    // Predicated region
    $region14: #{tpu_custom_call.1} parent=1 // pred_check
      _
    $region15: #{tpu_custom_call.1} parent=1 // pred_check_branch
      %54 = sbr.rel (0) target = $region17
    $region16: #{tpu_custom_call.1} parent=1 // pred_region
      %55 = dma.done [#allocation4], 256
    $region17: #{tpu_custom_call.1} parent=1 // pred_fallthru
      _
    // Predicated region
    $region18: #{tpu_custom_call.1} parent=1 // pred_check
      _
    $region19: #{tpu_custom_call.1} parent=1 // pred_check_branch
      %57 = sbr.rel (0) target = $region21
    $region20: #{tpu_custom_call.1} parent=1 // pred_region
      %58 = dma.done [#allocation7], 256
    $region21: #{tpu_custom_call.1} parent=1 // pred_fallthru
      _
    %s59 = sadd.s32 0, 0
    %s60 = smul.u32 4, %s59
    %s61 = ssub.s32 1, %s60
    %s62 = smul.u32 64, %s61
    %s63 = sadd.s32 0, 0
    %s64 = smul.u32 4, %s63
    %s65 = ssub.s32 1, %s64
    %s66 = smul.u32 64, %s65
    %p67 = scmp.eq.s32.totalorder 0, 0
    // Predicated region
    $region22: #{tpu_custom_call.1} parent=1 // pred_check
      %p68 = pneg %p67
    $region23: #{tpu_custom_call.1} parent=1 // pred_check_branch
      %70 = sbr.rel (%p68) target = $region25
    $region24: #{tpu_custom_call.1} parent=1 // pred_region
      %vm71 = vcmask 130048
      %72 = vst.msk [vmem:[#allocation2] sm:$0xff] %vm71, 0.0
    $region25: #{tpu_custom_call.1} parent=1 // pred_fallthru
      _
    %v73 = vld [vmem:[#allocation3] sm:$0xf]
    %v74 = vld [vmem:[#allocation3 + $0x4] sm:$0xf]
    %v75 = vld [vmem:[#allocation3 + $0x8] sm:$0xf]
    %v76 = vld [vmem:[#allocation3 + $0xc] sm:$0xf]
    %v77 = vunpack.c.l.bf16 %v73
    %v78 = vunpack.c.l.bf16 %v74
    %v79 = vunpack.c.l.bf16 %v75
    %v80 = vunpack.c.l.bf16 %v76
    %v81 = vld [vmem:[#allocation6] sm:$0xf]
    %v82 = vld [vmem:[#allocation6 + $0x4] sm:$0xf]
    %v83 = vld [vmem:[#allocation6 + $0x8] sm:$0xf]
    %v84 = vld [vmem:[#allocation6 + $0xc] sm:$0xf]
    %v85 = vunpack.c.l.bf16 %v81
    %v86 = vunpack.c.l.bf16 %v82
    %v87 = vunpack.c.l.bf16 %v83
    %v88 = vunpack.c.l.bf16 %v84
    %v89 = vmax.f32 %v77, 0.0
    %v90 = vmax.f32 %v78, 0.0
    %v91 = vmax.f32 %v79, 0.0
    %v92 = vmax.f32 %v80, 0.0
    %v93 = vmul.f32 %v77, %v85
    %v94 = vmul.f32 %v78, %v86
    %v95 = vmul.f32 %v79, %v87
    %v96 = vmul.f32 %v80, %v88
    %v97 = vsub.f32 %v89, %v93
    %v98 = vsub.f32 %v90, %v94
    %v99 = vsub.f32 %v91, %v95
    %v100 = vsub.f32 %v92, %v96
    %v101 = vand.u32 2147483647, %v77
    %v102 = vand.u32 2147483647, %v78
    %v103 = vand.u32 2147483647, %v79
    %v104 = vand.u32 2147483647, %v80
    %v105 = vsub.f32 0.0, %v101
    %v106 = vsub.f32 0.0, %v102
    %v107 = vsub.f32 0.0, %v103
    %v108 = vsub.f32 0.0, %v104
    %v109 = vmul.f32 %v105, 1.442695
    %v110 = vpow.pop %v109
    %v111 = vmul.f32 %v106, 1.442695
    %v112 = vpow.pop %v111
    %v113 = vmul.f32 %v107, 1.442695
    %v114 = vpow.pop %v113
    %v115 = vmul.f32 %v108, 1.442695
    %v116 = vpow.pop %v115
    %v117 = vadd.f32 %v110, 1.0
    %v118 = vlog2.pop %v117
    %v119 = vmul.f32 %v118, 0.6931472
    %v120 = vmul.f32 -0.5, %v110
    %v121 = vadd.f32 %v120, 1.0
    %v122 = vmul.f32 %v121, %v110
    %v123 = vand.u32 2147483647, %v110
    %vm124 = vcmp.lt.f32.partialorder %v123, 0.0004427343
    %v125 = vsel %vm124, %v122, %v119
    %v126 = vadd.f32 %v112, 1.0
    %v127 = vlog2.pop %v126
    %v128 = vmul.f32 %v127, 0.6931472
    %v129 = vmul.f32 -0.5, %v112
    %v130 = vadd.f32 %v129, 1.0
    %v131 = vmul.f32 %v130, %v112
    %v132 = vand.u32 2147483647, %v112
    %vm133 = vcmp.lt.f32.partialorder %v132, 0.0004427343
    %v134 = vsel %vm133, %v131, %v128
    %v135 = vadd.f32 %v114, 1.0
    %v136 = vlog2.pop %v135
    %v137 = vmul.f32 %v136, 0.6931472
    %v138 = vmul.f32 -0.5, %v114
    %v139 = vadd.f32 %v138, 1.0
    %v140 = vmul.f32 %v139, %v114
    %v141 = vand.u32 2147483647, %v114
    %vm142 = vcmp.lt.f32.partialorder %v141, 0.0004427343
    %v143 = vsel %vm142, %v140, %v137
    %v144 = vadd.f32 %v116, 1.0
    %v145 = vlog2.pop %v144
    %v146 = vmul.f32 %v145, 0.6931472
    %v147 = vmul.f32 -0.5, %v116
    %v148 = vadd.f32 %v147, 1.0
    %v149 = vmul.f32 %v148, %v116
    %v150 = vand.u32 2147483647, %v116
    %vm151 = vcmp.lt.f32.partialorder %v150, 0.0004427343
    %v152 = vsel %vm151, %v149, %v146
    %v153 = vadd.f32 %v97, %v125
    %v154 = vadd.f32 %v98, %v134
    %v155 = vadd.f32 %v99, %v143
    %v156 = vadd.f32 %v100, %v152
    %s157 = sadd.s32 0, 0
    %s158 = smul.u32 %s157, 32
    %s159 = sadd.s32 %s158, 32
    %p160 = scmp.gt.s32.totalorder %s159, 8
    %p161 = scmp.le.s32.totalorder %s159, 8
    // Predicated region
    $region26: #{tpu_custom_call.1} parent=1 // pred_check
      %p162 = pneg %p161
    $region27: #{tpu_custom_call.1} parent=1 // pred_check_branch
      %164 = sbr.rel (%p162) target = $region29
    $region28: #{tpu_custom_call.1} parent=1 // pred_region
      %v165 = vld [vmem:[#allocation2] sm:$0xff]
      %vm166 = vcmask 130048
      %v167 = vsel %vm166, %v153, 0.0
      %v168 = vsel %vm166, %v154, 0.0
      %v169 = vadd.f32 %v167, %v168
      %v170 = vsel %vm166, %v155, 0.0
      %v171 = vadd.f32 %v169, %v170
      %v172 = vsel %vm166, %v156, 0.0
      %v173 = vadd.f32 %v171, %v172
      %v174 = vadd.f32 %v165, %v173
      %175 = vst.msk [vmem:[#allocation2] sm:$0xff] %vm166, %v174
    $region29: #{tpu_custom_call.1} parent=1 // pred_fallthru
      _
    // Predicated region
    $region30: #{tpu_custom_call.1} parent=1 // pred_check
      %p176 = pneg %p160
    $region31: #{tpu_custom_call.1} parent=1 // pred_check_branch
      %178 = sbr.rel (%p176) target = $region33
    $region32: #{tpu_custom_call.1} parent=1 // pred_region
      %v179 = vlaneseq
      %v180 = vshrl.u32 %v179, 7
      %v181 = vadd.s32 %v180, 8
      %v182 = vadd.s32 %v180, 16
      %v183 = vadd.s32 %v180, 24
      %v184 = vstv %s158
      %v185 = vadd.s32 %v184, %v180
      %v186 = vadd.s32 %v184, %v181
      %v187 = vadd.s32 %v184, %v182
      %v188 = vadd.s32 %v184, %v183
      %vm189 = vcmp.lt.s32.totalorder %v185, 8
      %vm190 = vcmp.lt.s32.totalorder %v186, 8
      %vm191 = vcmp.lt.s32.totalorder %v187, 8
      %vm192 = vcmp.lt.s32.totalorder %v188, 8
      %v193 = vsel %vm189, 1, 0
      %v194 = vsel %vm190, 1, 0
      %v195 = vsel %vm191, 1, 0
      %v196 = vsel %vm192, 1, 0
      %vm197 = vcmp.eq.s32.totalorder %v193, 1
      %vm198 = vcmp.eq.s32.totalorder %v194, 1
      %vm199 = vcmp.eq.s32.totalorder %v195, 1
      %vm200 = vcmp.eq.s32.totalorder %v196, 1
      %v201 = vsel %vm197, %v153, 0.0
      %v202 = vsel %vm198, %v154, 0.0
      %v203 = vsel %vm199, %v155, 0.0
      %v204 = vsel %vm200, %v156, 0.0
      %v205 = vld [vmem:[#allocation2] sm:$0xff]
      %vm206 = vcmask 130048
      %v207 = vsel %vm206, %v201, 0.0
      %v208 = vsel %vm206, %v202, 0.0
      %v209 = vadd.f32 %v207, %v208
      %v210 = vsel %vm206, %v203, 0.0
      %v211 = vadd.f32 %v209, %v210
      %v212 = vsel %vm206, %v204, 0.0
      %v213 = vadd.f32 %v211, %v212
      %v214 = vadd.f32 %v205, %v213
      %215 = vst.msk [vmem:[#allocation2] sm:$0xff] %vm206, %v214
    $region33: #{tpu_custom_call.1} parent=1 // pred_fallthru
      _
    // Predicated region
    $region34: #{tpu_custom_call.1} parent=1 // pred_check
      %p216 = pneg %p67
    $region35: #{tpu_custom_call.1} parent=1 // pred_check_branch
      %218 = sbr.rel (%p216) target = $region37
    $region36: #{tpu_custom_call.1} parent=1 // pred_region
      %v219 = vld [vmem:[#allocation2] sm:$0xff]
      %vm220 = vcmask 130048
      %v221 = vsel %vm220, %v219, 0.0
      %v222 = vrot.slane %v221, 4
      %v223 = vadd.f32 %v221, %v222
      %v224 = vrot.slane %v223, 2
      %v225 = vadd.f32 %v223, %v224
      %v226 = vrot.slane %v225, 1
      %v227 = vadd.f32 %v225, %v226
      %v228 = vld [vmem:[%s2] sm:$0x1]
      %v229 = vmul.f32 %v227, %v228
      %vm230 = vcmask 122880
      %v231 = vsel %vm230, %v229, 0.0
      %232 = vadd.xlane.f32.xlu0 %v231
      %v233 = vpop.xlane.xlu0 %232
      %v234 = vrot.slane %v233, 4
      %v235 = vadd.f32 %v233, %v234
      %v236 = vrot.slane %v235, 2
      %v237 = vadd.f32 %v235, %v236
      %v238 = vrot.slane %v237, 1
      %v239 = vadd.f32 %v237, %v238
      %s240 = vtos %v239
      %s241 = smul.f32 %s240, 0.0078125
      %v242 = vstv %s241
      %243 = vst [vmem:[#allocation8] sm:$0xff] %v242
    $region37: #{tpu_custom_call.1} parent=1 // pred_fallthru
      _
    // Predicated region
    $region38: #{tpu_custom_call.1} parent=1 // pred_check
      _
    $region39: #{tpu_custom_call.1} parent=1 // pred_check_branch
      %245 = sbr.rel (0) target = $region41
    $region40: #{tpu_custom_call.1} parent=1 // pred_region
      %s247 = ssub.s32 128, 128
      %248 = vsyncadd [#allocation5], %s247
      %s250 = sshll.u32 [#allocation8], 4
      %s251 = int_to_ptr.vmem [resolvable:$true] %s250
      %253 = dma.vmem_to_hbm [thread:$0]  %s251, 128, %s3, [#allocation5]
    $region41: #{tpu_custom_call.1} parent=1 // pred_fallthru
      _
    // Predicated region
    $region42: #{tpu_custom_call.1} parent=1 // pred_check
      _
    $region43: #{tpu_custom_call.1} parent=1 // pred_check_branch
      %255 = sbr.rel (0) target = $region45
    $region44: #{tpu_custom_call.1} parent=1 // pred_region
      %256 = dma.done [#allocation5], 128
    $region45: #{tpu_custom_call.1} parent=1 // pred_fallthru
      _
    %257 = vsyncpa [#allocation4], 1
    %258 = vsyncpa [#allocation7], 1
    %259 = vsyncpa [#allocation5], 1

</llo_original>
